<compile_context>
chip_gen: v7x
topology: tpu7x:2x2x1
jax: 0.10.0
libtpu: 0.0.40
codegen_flags: <defaults>
</compile_context>

<pallas_src>
import jax
import jax.numpy as jnp
from jax.experimental import pallas as pl
from jax.experimental.pallas import tpu as pltpu

# ---- static model config (small stand-in shapes) ---------------------------
B = 2            # batch
L = 72           # sequence length: matches MaxPool kernels (70, 69, 68) in the module
D = 32           # embedding dim (stand-in for spacy vector_len=300)
F = 16           # conv filters per branch (stand-in for 100)
H1 = 30          # fc1 width
NCLS = 3         # fc2 / output classes
KS = (3, 4, 5)
KMAX = KS[-1]
KD = KMAX * D            # fused conv contraction depth (160)
FT = len(KS) * F         # concatenated conv features (48)
M = B * L                # conv matmul rows: batch folded into positions (144)
PK_ROWS = L + FT + 1     # packed f32 param slab rows (121)


def convnet_kernel(xi_ref, wc_ref, pk_ref, out_ref):
    """Single invocation, whole batch.

    xi_ref:  (B*L, KMAX*D) bf16  im2col LHS, built wrapper-side
    wc_ref:  (KMAX*D, 3F)  bf16  all three conv branches, zero-padded per branch
    pk_ref:  (L+3F+1, 3F)  f32   rows [0:L)      = conv bias merged with -inf mask
                                  rows [L:L+3F)   = fused fc1@fc2 weight (cols 0:NCLS)
                                  row  L+3F       = fused fc bias        (cols 0:NCLS)
    out_ref: (B, NCLS)
    """
    # One fused MXU matmul for all three conv branches over the whole batch
    # (bf16 in, f32 accumulate).
    conv = jnp.dot(xi_ref[...], wc_ref[...],
                   preferred_element_type=jnp.float32)          # (B*L, 3F)
    conv = conv.reshape(B, L, FT)                               # L multiple of 8

    # Merged bias + validity mask: bias where the position is valid for that
    # branch, -inf otherwise. ReLU clamps masked (and cross-batch window) rows
    # to 0, which cannot win the max since valid relu values are >= 0.
    bm = pk_ref[0:L, :]                                         # (L, 3F)
    conv = jnp.maximum(conv + bm[None, :, :], 0.0)              # bias + ReLU + mask

    # MaxPool2d((L-k+1, 1)) per branch == max over the position axis.
    feat = jnp.max(conv, axis=1)                                # (B, 3F)

    # TODO(synk): nn.Dropout() is identity in eval mode; no stochastic drop here.
    # fc1 and fc2 have no nonlinearity between them in the module, so they are
    # fused offline into one (3F, NCLS) matmul.
    w = pk_ref[L:L + FT, 0:NCLS]                                # (3F, NCLS)
    b = pk_ref[L + FT:L + FT + 1, 0:NCLS]                       # (1, NCLS)
    out_ref[...] = (jnp.dot(feat, w, preferred_element_type=jnp.float32)
                    + b).astype(out_ref.dtype)


def prepare_params(p):
    """One-time packing / casting of parameters into the two kernel operands."""
    cols, biases = [], []
    for k, wk, bk in ((3, p["w3"], p["b3"]), (4, p["w4"], p["b4"]), (5, p["w5"], p["b5"])):
        w2d = wk.reshape(k * D, F)                         # (j, d) -> row j*D + d
        cols.append(jnp.pad(w2d, ((0, KD - k * D), (0, 0))))
        biases.append(bk)
    wc = jnp.concatenate(cols, axis=1).astype(jnp.bfloat16)        # (KD, 3F) bf16
    bc = jnp.concatenate(biases, axis=1)                            # (1, 3F)  f32

    # Static validity mask merged into the bias: branch with kernel height k
    # has L-k+1 valid positions; the rest get -inf.
    pos = jnp.arange(L, dtype=jnp.int32)[:, None]
    limit = jnp.concatenate(
        [jnp.full((F,), L - k + 1, jnp.int32) for k in KS])[None, :]
    bm = jnp.where(pos < limit, jnp.broadcast_to(bc, (L, FT)), -jnp.inf)   # (L, 3F)

    # Offline fc1 @ fc2 fusion (exact up to f32 rounding: no activation between).
    w_fused = p["fc1w"] @ p["fc2w"]                        # (3F, NCLS)
    b_fused = p["fc1b"] @ p["fc2w"] + p["fc2b"]            # (1, NCLS)

    pk = jnp.concatenate(
        [bm,
         jnp.pad(w_fused, ((0, 0), (0, FT - NCLS))),
         jnp.pad(b_fused, ((0, 0), (0, FT - NCLS)))],
        axis=0).astype(jnp.float32)                        # (PK_ROWS, 3F) f32
    return wc, pk


def im2col_bf16(x):
    """(B, L, D) f32 -> (B*L, KMAX*D) bf16 im2col LHS. Layout plumbing kept in
    the wrapper so no shuffles/casts run inside the kernel."""
    xf = jnp.pad(x.reshape(M, D), ((0, KMAX - 1), (0, 0)))          # zero tail rows
    xi = jnp.concatenate([xf[j:j + M, :] for j in range(KMAX)], axis=-1)   # (M, KD)
    return xi.astype(jnp.bfloat16)


@jax.jit
def convnet_forward(x, wc, pk):
    """x: (B, L, D) f32 (PyTorch NCHW (B,1,L,D) squeezed). Returns (B, NCLS)."""
    xi = im2col_bf16(x)
    vmem = lambda: pl.BlockSpec(memory_space=pltpu.MemorySpace.VMEM)
    return pl.pallas_call(
        convnet_kernel,
        out_shape=jax.ShapeDtypeStruct((B, NCLS), jnp.float32),
        in_specs=[vmem(), vmem(), vmem()],
        out_specs=vmem(),
    )(xi, wc, pk)


def reference_forward(x, p):
    """Plain-JAX f32 reference with identical semantics (unfused fc1 -> fc2)."""
    outs = []
    for k, w, b in ((3, p["w3"], p["b3"]), (4, p["w4"], p["b4"]), (5, p["w5"], p["b5"])):
        pos = L - k + 1
        conv = jnp.zeros((B, pos, F), jnp.float32)
        for j in range(k):
            conv = conv + jnp.einsum("bpd,df->bpf", x[:, j:j + pos, :], w[j])
        conv = jnp.maximum(conv + b[None], 0.0)
        outs.append(jnp.max(conv, axis=1))     # (B, F)
    feat = jnp.concatenate(outs, axis=1)       # (B, 3F)
    h = feat @ p["fc1w"] + p["fc1b"]
    return h @ p["fc2w"] + p["fc2b"]


def make_params(key):
    keys = jax.random.split(key, 10)
    s = 0.05
    return {
        # Conv weights stored as (K, D, F): PyTorch Conv2d weight (F, 1, K, D)
        # transposed so the contraction dims (K, D) sit against the filter dim.
        "w3": s * jax.random.normal(keys[0], (3, D, F), jnp.float32),
        "b3": s * jax.random.normal(keys[1], (1, F), jnp.float32),
        "w4": s * jax.random.normal(keys[2], (4, D, F), jnp.float32),
        "b4": s * jax.random.normal(keys[3], (1, F), jnp.float32),
        "w5": s * jax.random.normal(keys[4], (5, D, F), jnp.float32),
        "b5": s * jax.random.normal(keys[5], (1, F), jnp.float32),
        # Linear layers stored as (in, out) == PyTorch weight.T
        "fc1w": s * jax.random.normal(keys[6], (3 * F, H1), jnp.float32),
        "fc1b": s * jax.random.normal(keys[7], (1, H1), jnp.float32),
        "fc2w": s * jax.random.normal(keys[8], (H1, NCLS), jnp.float32),
        "fc2b": s * jax.random.normal(keys[9], (1, NCLS), jnp.float32),
    }


if __name__ == "__main__":
    key = jax.random.PRNGKey(0)
    kx, kp = jax.random.split(key)
    # Input corresponds to PyTorch NCHW (B, 1, L, D), squeezed to (B, L, D).
    x = jax.random.normal(kx, (B, L, D), jnp.float32)
    params = make_params(kp)

    # One-time parameter packing (bf16 conv slab + one f32 slab with
    # bias-mask + fused fc weights): done at init, not per forward call.
    wc, pk = prepare_params(params)
    wc, pk = jax.block_until_ready((wc, pk))

    out = convnet_forward(x, wc, pk)
    out = jax.block_until_ready(out)

    ref = reference_forward(x, params)
    assert out.shape == (B, NCLS)
    # Tolerance relaxed from 1e-4 because conv matmul inputs are bf16 (f32 acc).
    assert jnp.allclose(out, ref, atol=2e-2, rtol=2e-2), (out, ref)

    print("KERNEL_OK")
</pallas_src>

<mosaic_0001>
module attributes {stable_mosaic.version = 11 : i64} {
  func.func @convnet_kernel(%arg0: memref<144x160xbf16, #tpu.memory_space<vmem>>, %arg1: memref<160x48xbf16, #tpu.memory_space<vmem>>, %arg2: memref<121x48xf32, #tpu.memory_space<vmem>>, %arg3: memref<2x3xf32, #tpu.memory_space<vmem>>) attributes {dimension_semantics = [], scalar_prefetch = 0 : i64, scratch_operands = 0 : i64, tpu.core_type = #tpu.core_type<tc>} {
    %c0 = arith.constant 0 : index
    %c0_0 = arith.constant 0 : index
    %0 = vector.load %arg0[%c0, %c0_0] : memref<144x160xbf16, #tpu.memory_space<vmem>>, vector<144x160xbf16>
    %c0_1 = arith.constant 0 : index
    %c0_2 = arith.constant 0 : index
    %1 = vector.load %arg1[%c0_1, %c0_2] : memref<160x48xbf16, #tpu.memory_space<vmem>>, vector<160x48xbf16>
    %cst = arith.constant dense<0.000000e+00> : vector<144x48xf32>
    %2 = tpu.matmul %0, %1, %cst {dimension_numbers = #tpu.dot_dimension_numbers<[1], [0], [0], [1], [0, 0, 1, 1], [], []>} : vector<144x160xbf16>, vector<160x48xbf16>, vector<144x48xf32> -> vector<144x48xf32>
    %3 = vector.shape_cast %2 : vector<144x48xf32> to vector<2x72x48xf32>
    %c0_3 = arith.constant 0 : index
    %c0_4 = arith.constant 0 : index
    %4 = vector.load %arg2[%c0_3, %c0_4] : memref<121x48xf32, #tpu.memory_space<vmem>>, vector<72x48xf32>
    %5 = vector.shape_cast %4 : vector<72x48xf32> to vector<1x72x48xf32>
    %6 = vector.broadcast %5 : vector<1x72x48xf32> to vector<2x72x48xf32>
    %7 = arith.addf %3, %6 : vector<2x72x48xf32>
    %cst_5 = arith.constant 0.000000e+00 : f32
    %8 = vector.broadcast %cst_5 : f32 to vector<2x72x48xf32>
    %9 = arith.maximumf %7, %8 : vector<2x72x48xf32>
    %cst_6 = arith.constant dense<0xFF800000> : vector<2x48xf32>
    %10 = vector.multi_reduction <maximumf>, %9, %cst_6 [1] : vector<2x72x48xf32> to vector<2x48xf32>
    %c72 = arith.constant 72 : index
    %c0_7 = arith.constant 0 : index
    %11 = vector.load %arg2[%c72, %c0_7] : memref<121x48xf32, #tpu.memory_space<vmem>>, vector<48x3xf32>
    %c120 = arith.constant 120 : index
    %c0_8 = arith.constant 0 : index
    %12 = vector.load %arg2[%c120, %c0_8] : memref<121x48xf32, #tpu.memory_space<vmem>>, vector<1x3xf32>
    %cst_9 = arith.constant dense<0.000000e+00> : vector<2x3xf32>
    %13 = tpu.matmul %10, %11, %cst_9 {dimension_numbers = #tpu.dot_dimension_numbers<[1], [0], [0], [1], [0, 0, 1, 1], [], []>} : vector<2x48xf32>, vector<48x3xf32>, vector<2x3xf32> -> vector<2x3xf32>
    %14 = vector.broadcast %12 : vector<1x3xf32> to vector<2x3xf32>
    %15 = arith.addf %13, %14 : vector<2x3xf32>
    %c0_10 = arith.constant 0 : index
    %c0_11 = arith.constant 0 : index
    %16 = vector.load %arg3[%c0_10, %c0_11] : memref<2x3xf32, #tpu.memory_space<vmem>>, vector<2x3xf32>
    tpu.vector_store %arg3[%c0_10, %c0_11], %15 {strides = array<i32>} : memref<2x3xf32, #tpu.memory_space<vmem>>, vector<2x3xf32>,
    return
  }
}

</mosaic_0001>

<llo_original>
// kernel: convnet_forward.1
$region0: #{convnet_forward.1}
  #allocation0 [shape = 'u32[]', space=smem, size = 0x4, offset = 0x4, fixed_abs, tag = 'smem constant byte address 0x4 - core index']
  #allocation1 [shape = 'u32[144,128]{1,0:T(1,128)}', space=vmem, size = 0x12000, scoped, tag = 'internal scratch']
  %s0 = inlined_call_operand.vmem [shape: bf16[144,160], index: 0, kind: input, shape index: {}]
  %s1 = inlined_call_operand.vmem [shape: bf16[160,48], index: 1, kind: input, shape index: {}]
  %s2 = inlined_call_operand.vmem [shape: f32[121,48], index: 2, kind: input, shape index: {}]
  %s3 = inlined_call_operand.hbm [shape: f32[2,3], index: 3, kind: output, shape index: {}]
  %s4 = sld [smem:[#allocation0]]
  $region22: #{convnet_forward.1} parent=0
    _
  %s6 = ssub.s32 1, %s4
  %s7 = scalar_select 0, %s6, %s4
  $region1: #{convnet_forward.1} parent=0
    #allocation2 [shape = 'u8[1024]{0}', space=vmem, size = 0x400, scoped, tag = 'output window, operand 0, single buffered']
    #allocation3 [shape = 's32[1]{0}', space=sflag, size = 0x4, scoped, tag = 'scoped memory for convnet_forward.1']
    %8 = vsyncpa [#allocation3], 0
    // Predicated region
    $region2: #{convnet_forward.1} parent=1 // pred_check
      _
    $region3: #{convnet_forward.1} parent=1 // pred_check_branch
      %10 = sbr.rel (0) target = $region5
    $region4: #{convnet_forward.1} parent=1 // pred_region
      _
    $region5: #{convnet_forward.1} parent=1 // pred_fallthru
      _
    // Predicated region
    $region6: #{convnet_forward.1} parent=1 // pred_check
      _
    $region7: #{convnet_forward.1} parent=1 // pred_check_branch
      %12 = sbr.rel (0) target = $region9
    $region8: #{convnet_forward.1} parent=1 // pred_region
      _
    $region9: #{convnet_forward.1} parent=1 // pred_fallthru
      _
    // Predicated region
    $region10: #{convnet_forward.1} parent=1 // pred_check
      _
    $region11: #{convnet_forward.1} parent=1 // pred_check_branch
      %14 = sbr.rel (0) target = $region13
    $region12: #{convnet_forward.1} parent=1 // pred_region
      _
    $region13: #{convnet_forward.1} parent=1 // pred_fallthru
      _
    %v16 = vld [vmem:[%s0] sm:$0xff]
    %v17 = vld [vmem:[%s0 + $0x8] sm:$0xff]
    %v18 = vld [vmem:[%s0 + $0x10] sm:$0xff]
    %v19 = vld [vmem:[%s0 + $0x18] sm:$0xff]
    %v20 = vld [vmem:[%s0 + $0x20] sm:$0xff]
    %v21 = vld [vmem:[%s0 + $0x28] sm:$0xff]
    %v22 = vld [vmem:[%s0 + $0x30] sm:$0xff]
    %v23 = vld [vmem:[%s0 + $0x38] sm:$0xff]
    %v24 = vld [vmem:[%s0 + $0x40] sm:$0xff]
    %v25 = vld [vmem:[%s0 + $0x48] sm:$0xff]
    %v26 = vld [vmem:[%s0 + $0x50] sm:$0xff]
    %v27 = vld [vmem:[%s0 + $0x58] sm:$0xff]
    %v28 = vld [vmem:[%s0 + $0x60] sm:$0xff]
    %v29 = vld [vmem:[%s0 + $0x68] sm:$0xff]
    %v30 = vld [vmem:[%s0 + $0x70] sm:$0xff]
    %v31 = vld [vmem:[%s0 + $0x78] sm:$0xff]
    %v32 = vld [vmem:[%s0 + $0x80] sm:$0xff]
    %v33 = vld [vmem:[%s0 + $0x88] sm:$0xff]
    %v34 = vld [vmem:[%s1] sm:$0xf]
    %v35 = vld [vmem:[%s1 + $0x4] sm:$0xf]
    %v36 = vld [vmem:[%s1 + $0x8] sm:$0xf]
    %v37 = vld [vmem:[%s1 + $0xc] sm:$0xf]
    %v38 = vld [vmem:[%s1 + $0x10] sm:$0xf]
    %v39 = vld [vmem:[%s1 + $0x14] sm:$0xf]
    %v40 = vld [vmem:[%s1 + $0x18] sm:$0xf]
    %v41 = vld [vmem:[%s1 + $0x1c] sm:$0xf]
    %v42 = vld [vmem:[%s1 + $0x20] sm:$0xf]
    %v43 = vld [vmem:[%s1 + $0x24] sm:$0xf]
    %v44 = vld [vmem:[%s1 + $0x28] sm:$0xf]
    %v45 = vld [vmem:[%s1 + $0x2c] sm:$0xf]
    %v46 = vld [vmem:[%s1 + $0x30] sm:$0xf]
    %v47 = vld [vmem:[%s1 + $0x34] sm:$0xf]
    %v48 = vld [vmem:[%s1 + $0x38] sm:$0xf]
    %v49 = vld [vmem:[%s1 + $0x3c] sm:$0xf]
    %v50 = vld [vmem:[%s1 + $0x40] sm:$0xf]
    %v51 = vld [vmem:[%s1 + $0x44] sm:$0xf]
    %v52 = vld [vmem:[%s1 + $0x48] sm:$0xf]
    %v53 = vld [vmem:[%s1 + $0x4c] sm:$0xf]
    %v72 = vunpack.c.l.b16 %v16
    %v73 = vunpack.c.h.b16 %v16
    %v74 = vunpack.c.l.b16 %v17
    %v75 = vunpack.c.h.b16 %v17
    %v76 = vunpack.c.l.b16 %v18
    %v77 = vunpack.c.h.b16 %v18
    %v78 = vunpack.c.l.b16 %v19
    %v79 = vunpack.c.h.b16 %v19
    %v80 = vunpack.c.l.b16 %v20
    %v81 = vunpack.c.h.b16 %v20
    %v82 = vunpack.c.l.b16 %v21
    %v83 = vunpack.c.h.b16 %v21
    %v84 = vunpack.c.l.b16 %v22
    %v85 = vunpack.c.h.b16 %v22
    %v86 = vunpack.c.l.b16 %v23
    %v87 = vunpack.c.h.b16 %v23
    %v88 = vunpack.c.l.b16 %v24
    %v89 = vunpack.c.h.b16 %v24
    %v90 = vunpack.c.l.b16 %v25
    %v91 = vunpack.c.h.b16 %v25
    %v92 = vunpack.c.l.b16 %v26
    %v93 = vunpack.c.h.b16 %v26
    %v94 = vunpack.c.l.b16 %v27
    %v95 = vunpack.c.h.b16 %v27
    %v96 = vunpack.c.l.b16 %v28
    %v97 = vunpack.c.h.b16 %v28
    %v98 = vunpack.c.l.b16 %v29
    %v99 = vunpack.c.h.b16 %v29
    %v100 = vunpack.c.l.b16 %v30
    %v101 = vunpack.c.h.b16 %v30
    %v102 = vunpack.c.l.b16 %v31
    %v103 = vunpack.c.h.b16 %v31
    %v104 = vunpack.c.l.b16 %v32
    %v105 = vunpack.c.h.b16 %v32
    %v106 = vunpack.c.l.b16 %v33
    %v107 = vunpack.c.h.b16 %v33
    %v108 = vpack.c.b16 %v74, %v72
    %v109 = vpack.c.b16 %v75, %v73
    %v110 = vpack.c.b16 %v78, %v76
    %v111 = vpack.c.b16 %v79, %v77
    %v112 = vpack.c.b16 %v82, %v80
    %v113 = vpack.c.b16 %v83, %v81
    %v114 = vpack.c.b16 %v86, %v84
    %v115 = vpack.c.b16 %v87, %v85
    %v116 = vpack.c.b16 %v90, %v88
    %v117 = vpack.c.b16 %v91, %v89
    %v118 = vpack.c.b16 %v94, %v92
    %v119 = vpack.c.b16 %v95, %v93
    %v120 = vpack.c.b16 %v98, %v96
    %v121 = vpack.c.b16 %v99, %v97
    %v122 = vpack.c.b16 %v102, %v100
    %v123 = vpack.c.b16 %v103, %v101
    %v124 = vpack.c.b16 %v106, %v104
    %v125 = vpack.c.b16 %v107, %v105
    %v155 = vunpack.c.l.b16 %v34
    %v156 = vunpack.c.l.b16 %v35
    %v157 = vunpack.c.l.b16 %v36
    %v158 = vunpack.c.l.b16 %v37
    %v159 = vunpack.c.l.b16 %v38
    %v160 = vunpack.c.l.b16 %v39
    %v161 = vunpack.c.l.b16 %v40
    %v162 = vunpack.c.l.b16 %v41
    %v163 = vunpack.c.l.b16 %v42
    %v164 = vunpack.c.l.b16 %v43
    %v165 = vunpack.c.l.b16 %v44
    %v166 = vunpack.c.l.b16 %v45
    %v167 = vunpack.c.l.b16 %v46
    %v168 = vunpack.c.l.b16 %v47
    %v169 = vunpack.c.l.b16 %v48
    %v170 = vunpack.c.l.b16 %v49
    %v171 = vunpack.c.l.b16 %v50
    %v172 = vunpack.c.l.b16 %v51
    %v173 = vunpack.c.l.b16 %v52
    %v174 = vunpack.c.l.b16 %v53
    %v175 = vpack.c.b16 %v156, %v155
    %v176 = vpack.c.b16 %v158, %v157
    %v177 = vpack.c.b16 %v160, %v159
    %v178 = vpack.c.b16 %v162, %v161
    %v179 = vpack.c.b16 %v164, %v163
    %v180 = vpack.c.b16 %v166, %v165
    %v181 = vpack.c.b16 %v168, %v167
    %v182 = vpack.c.b16 %v170, %v169
    %v183 = vpack.c.b16 %v172, %v171
    %v184 = vpack.c.b16 %v174, %v173
    %vm195 = vcmask 261120
    %v197 = vsel %vm195, %v109, 0
    %v200 = vsel %vm195, %v111, 0
    %v203 = vsel %vm195, %v113, 0
    %v206 = vsel %vm195, %v115, 0
    %v209 = vsel %vm195, %v117, 0
    %v212 = vsel %vm195, %v119, 0
    %v215 = vsel %vm195, %v121, 0
    %v218 = vsel %vm195, %v123, 0
    %v221 = vsel %vm195, %v125, 0
    %223 = vmatprep.subr.bf16.mxu0 0
    %224 = vmatpush1.bf16.msra.mxu0 %v175
    %225 = vmatprep.subr.bf16.mxu0 0
    %226 = vmatpush1.bf16.msra.mxu0 %v176
    %227 = vmatprep.subr.bf16.mxu0 0
    %228 = vmatpush1.bf16.msra.mxu0 %v177
    %229 = vmatprep.subr.bf16.mxu0 0
    %230 = vmatpush1.bf16.msra.mxu0 %v178
    %231 = vmatprep.subr.bf16.mxu0 0
    %232 = vmatpush1.bf16.msra.mxu0 %v179
    %233 = vmatprep.subr.bf16.mxu0 0
    %234 = vmatpush1.bf16.msra.mxu0 %v180
    %235 = vmatprep.subr.bf16.mxu0 0
    %236 = vmatpush1.bf16.msra.mxu0 %v181
    %237 = vmatprep.subr.bf16.mxu0 0
    %238 = vmatpush1.bf16.msra.mxu0 %v182
    %239 = vmatprep.subr.bf16.mxu0 0
    %240 = vmatpush1.bf16.msra.mxu0 %v183
    %241 = vmatprep.subr.bf16.mxu0 0
    %242 = vmatpush1.bf16.msra.mxu0 %v184
    %243 = vmatprep.subr.bf16.mxu0 0
    %244 = vmatpush1.bf16.msra.mxu0 0
    %245 = vmatprep.subr.bf16.mxu0 0
    %246 = vmatpush1.bf16.msra.mxu0 0
    %247 = vmatprep.subr.bf16.mxu0 0
    %248 = vmatpush1.bf16.msra.mxu0 0
    %249 = vmatprep.subr.bf16.mxu0 0
    %250 = vmatpush1.bf16.msra.mxu0 0
    %251 = vmatprep.subr.bf16.mxu0 0
    %252 = vmatpush1.bf16.msra.mxu0 0
    %253 = vmatprep.subr.bf16.mxu0 0
    %254 = vmatpush1.bf16.msra.mxu0 0
    %255 = vmatprep.mubr.bf16.mxu0 %v197
    %256 = vmatmul.mubr.bf16.gmra.mrb[0].mxu0 %v108
    %v257 = vpop.f32.mrb[0].mxu0
    %v258 = vadd.f32 0.0, %v257
    %v259 = vpop.f32.mrb[0].mxu0
    %v260 = vpop.f32.mrb[0].mxu0
    %v261 = vadd.f32 0.0, %v260
    %v262 = vpop.f32.mrb[0].mxu0
    %263 = vmatprep.mubr.bf16.mxu0 %v200
    %264 = vmatmul.mubr.bf16.gmra.mrb[0].mxu0 %v110
    %v265 = vpop.f32.mrb[0].mxu0
    %v266 = vadd.f32 0.0, %v265
    %v267 = vpop.f32.mrb[0].mxu0
    %v268 = vpop.f32.mrb[0].mxu0
    %v269 = vadd.f32 0.0, %v268
    %v270 = vpop.f32.mrb[0].mxu0
    %271 = vmatprep.mubr.bf16.mxu0 %v203
    %272 = vmatmul.mubr.bf16.gmra.mrb[0].mxu0 %v112
    %v273 = vpop.f32.mrb[0].mxu0
    %v274 = vadd.f32 0.0, %v273
    %v275 = vpop.f32.mrb[0].mxu0
    %v276 = vpop.f32.mrb[0].mxu0
    %v277 = vadd.f32 0.0, %v276
    %v278 = vpop.f32.mrb[0].mxu0
    %279 = vmatprep.mubr.bf16.mxu0 %v206
    %280 = vmatmul.mubr.bf16.gmra.mrb[0].mxu0 %v114
    %v281 = vpop.f32.mrb[0].mxu0
    %v282 = vadd.f32 0.0, %v281
    %v283 = vpop.f32.mrb[0].mxu0
    %v284 = vpop.f32.mrb[0].mxu0
    %v285 = vadd.f32 0.0, %v284
    %v286 = vpop.f32.mrb[0].mxu0
    %287 = vmatprep.mubr.bf16.mxu0 %v209
    %288 = vmatmul.mubr.bf16.gmra.mrb[0].mxu0 %v116
    %v289 = vpop.f32.mrb[0].mxu0
    %v290 = vadd.f32 0.0, %v289
    %v291 = vpop.f32.mrb[0].mxu0
    %v292 = vpop.f32.mrb[0].mxu0
    %v293 = vadd.f32 0.0, %v292
    %v294 = vpop.f32.mrb[0].mxu0
    %295 = vmatprep.mubr.bf16.mxu0 %v212
    %296 = vmatmul.mubr.bf16.gmra.mrb[0].mxu0 %v118
    %v297 = vpop.f32.mrb[0].mxu0
    %v298 = vadd.f32 0.0, %v297
    %v299 = vpop.f32.mrb[0].mxu0
    %v300 = vpop.f32.mrb[0].mxu0
    %v301 = vadd.f32 0.0, %v300
    %v302 = vpop.f32.mrb[0].mxu0
    %303 = vmatprep.mubr.bf16.mxu0 %v215
    %304 = vmatmul.mubr.bf16.gmra.mrb[0].mxu0 %v120
    %v305 = vpop.f32.mrb[0].mxu0
    %v306 = vadd.f32 0.0, %v305
    %v307 = vpop.f32.mrb[0].mxu0
    %v308 = vpop.f32.mrb[0].mxu0
    %v309 = vadd.f32 0.0, %v308
    %v310 = vpop.f32.mrb[0].mxu0
    %311 = vmatprep.mubr.bf16.mxu0 %v218
    %312 = vmatmul.mubr.bf16.gmra.mrb[0].mxu0 %v122
    %v313 = vpop.f32.mrb[0].mxu0
    %v314 = vadd.f32 0.0, %v313
    %v315 = vpop.f32.mrb[0].mxu0
    %v316 = vpop.f32.mrb[0].mxu0
    %v317 = vadd.f32 0.0, %v316
    %v318 = vpop.f32.mrb[0].mxu0
    %319 = vmatprep.mubr.bf16.mxu0 %v221
    %320 = vmatmul.mubr.bf16.gmra.mrb[0].mxu0 %v124
    %v321 = vpop.f32.mrb[0].mxu0
    %v322 = vadd.f32 0.0, %v321
    %v323 = vpop.f32.mrb[0].mxu0
    %v324 = vpop.f32.mrb[0].mxu0
    %v325 = vadd.f32 0.0, %v324
    %v326 = vpop.f32.mrb[0].mxu0
    %327 = vdwg.mxu0
    %v328 = vld [vmem:[%s2] sm:$0xff]
    %v329 = vld [vmem:[%s2 + $0x8] sm:$0xff]
    %v330 = vld [vmem:[%s2 + $0x10] sm:$0xff]
    %v331 = vld [vmem:[%s2 + $0x18] sm:$0xff]
    %v332 = vld [vmem:[%s2 + $0x20] sm:$0xff]
    %v333 = vld [vmem:[%s2 + $0x28] sm:$0xff]
    %v334 = vld [vmem:[%s2 + $0x30] sm:$0xff]
    %v335 = vld [vmem:[%s2 + $0x38] sm:$0xff]
    %v336 = vld [vmem:[%s2 + $0x40] sm:$0xff]
    %v337 = vadd.f32 %v258, %v328
    %v338 = vadd.f32 %v261, %v329
    %v339 = vadd.f32 %v266, %v330
    %v340 = vadd.f32 %v269, %v331
    %v341 = vadd.f32 %v274, %v332
    %v342 = vadd.f32 %v277, %v333
    %v343 = vadd.f32 %v282, %v334
    %v344 = vadd.f32 %v285, %v335
    %v345 = vadd.f32 %v290, %v336
    %v346 = vadd.f32 %v293, %v328
    %v347 = vadd.f32 %v298, %v329
    %v348 = vadd.f32 %v301, %v330
    %v349 = vadd.f32 %v306, %v331
    %v350 = vadd.f32 %v309, %v332
    %v351 = vadd.f32 %v314, %v333
    %v352 = vadd.f32 %v317, %v334
    %v353 = vadd.f32 %v322, %v335
    %v354 = vadd.f32 %v325, %v336
    %v355 = vmax.f32 %v337, 0.0
    %v356 = vmax.f32 %v338, 0.0
    %v357 = vmax.f32 %v339, 0.0
    %v358 = vmax.f32 %v340, 0.0
    %v359 = vmax.f32 %v341, 0.0
    %v360 = vmax.f32 %v342, 0.0
    %v361 = vmax.f32 %v343, 0.0
    %v362 = vmax.f32 %v344, 0.0
    %v363 = vmax.f32 %v345, 0.0
    %v364 = vmax.f32 %v346, 0.0
    %v365 = vmax.f32 %v347, 0.0
    %v366 = vmax.f32 %v348, 0.0
    %v367 = vmax.f32 %v349, 0.0
    %v368 = vmax.f32 %v350, 0.0
    %v369 = vmax.f32 %v351, 0.0
    %v370 = vmax.f32 %v352, 0.0
    %v371 = vmax.f32 %v353, 0.0
    %v372 = vmax.f32 %v354, 0.0
    %vm373 = vcmask 392192
    %v374 = vsel %vm373, %v355, -inf
    %v375 = vsel %vm373, %v356, -inf
    %v376 = vsel %vm373, %v357, -inf
    %v377 = vmax.f32 %v374, %v376
    %v378 = vsel %vm373, %v358, -inf
    %v379 = vmax.f32 %v375, %v378
    %v380 = vsel %vm373, %v359, -inf
    %v381 = vmax.f32 %v377, %v380
    %v382 = vsel %vm373, %v360, -inf
    %v383 = vmax.f32 %v379, %v382
    %v384 = vsel %vm373, %v361, -inf
    %v385 = vmax.f32 %v381, %v384
    %v386 = vsel %vm373, %v362, -inf
    %v387 = vmax.f32 %v383, %v386
    %v388 = vsel %vm373, %v363, -inf
    %v389 = vmax.f32 %v385, %v388
    %v390 = vmax.f32 %v389, %v387
    %v391 = vrot.slane %v390, 4
    %v392 = vmax.f32 %v390, %v391
    %v393 = vrot.slane %v392, 2
    %v394 = vmax.f32 %v392, %v393
    %v395 = vrot.slane %v394, 1
    %v396 = vmax.f32 %v394, %v395
    %v397 = vsel %vm373, %v364, -inf
    %v398 = vsel %vm373, %v365, -inf
    %v399 = vsel %vm373, %v366, -inf
    %v400 = vmax.f32 %v397, %v399
    %v401 = vsel %vm373, %v367, -inf
    %v402 = vmax.f32 %v398, %v401
    %v403 = vsel %vm373, %v368, -inf
    %v404 = vmax.f32 %v400, %v403
    %v405 = vsel %vm373, %v369, -inf
    %v406 = vmax.f32 %v402, %v405
    %v407 = vsel %vm373, %v370, -inf
    %v408 = vmax.f32 %v404, %v407
    %v409 = vsel %vm373, %v371, -inf
    %v410 = vmax.f32 %v406, %v409
    %v411 = vsel %vm373, %v372, -inf
    %v412 = vmax.f32 %v408, %v411
    %v413 = vmax.f32 %v412, %v410
    %v414 = vrot.slane %v413, 4
    %v415 = vmax.f32 %v413, %v414
    %v416 = vrot.slane %v415, 2
    %v417 = vmax.f32 %v415, %v416
    %v418 = vrot.slane %v417, 1
    %v419 = vmax.f32 %v417, %v418
    %v420 = vld [vmem:[%s2 + $0x48] sm:$0xff]
    %v421 = vld [vmem:[%s2 + $0x50] sm:$0xff]
    %v422 = vld [vmem:[%s2 + $0x58] sm:$0xff]
    %v423 = vld [vmem:[%s2 + $0x60] sm:$0xff]
    %v424 = vld [vmem:[%s2 + $0x68] sm:$0xff]
    %v425 = vld [vmem:[%s2 + $0x70] sm:$0xff]
    %v426 = vld [vmem:[%s2 + $0x78] sm:$0x1]
    %v427 = vlaneseq
    %v428 = vshrl.u32 %v427, 7
    %v429 = vsub.s32 0, %v428
    %v430 = vrot.slane %v426, %v429
    %vm433 = vcmask 1041409
    %v434 = vsel %vm433, %v419, %v396
    %v435 = vsel %vm373, %v434, 0
    %437 = vmatprep.subr.mxu0 0.0
    %438 = vmatpush1.msra.mxu0 %v420
    %439 = vmatprep.subr.mxu0 0.0
    %440 = vmatpush1.msra.mxu0 %v421
    %441 = vmatprep.subr.mxu0 0.0
    %442 = vmatpush1.msra.mxu0 %v422
    %443 = vmatprep.subr.mxu0 0.0
    %444 = vmatpush1.msra.mxu0 %v423
    %445 = vmatprep.subr.mxu0 0.0
    %446 = vmatpush1.msra.mxu0 %v424
    %447 = vmatprep.subr.mxu0 0.0
    %448 = vmatpush1.msra.mxu0 %v425
    %449 = vmatprep.subr.mxu0 0.0
    %450 = vmatpush1.msra.mxu0 0.0
    %451 = vmatprep.subr.mxu0 0.0
    %452 = vmatpush1.msra.mxu0 0.0
    %453 = vmatprep.subr.mxu0 0.0
    %454 = vmatpush1.msra.mxu0 0.0
    %455 = vmatprep.subr.mxu0 0.0
    %456 = vmatpush1.msra.mxu0 0.0
    %457 = vmatprep.subr.mxu0 0.0
    %458 = vmatpush1.msra.mxu0 0.0
    %459 = vmatprep.subr.mxu0 0.0
    %460 = vmatpush1.msra.mxu0 0.0
    %461 = vmatprep.subr.mxu0 0.0
    %462 = vmatpush1.msra.mxu0 0.0
    %463 = vmatprep.subr.mxu0 0.0
    %464 = vmatpush1.msra.mxu0 0.0
    %465 = vmatprep.subr.mxu0 0.0
    %466 = vmatpush1.msra.mxu0 0.0
    %467 = vmatprep.subr.mxu0 0.0
    %468 = vmatpush1.msra.mxu0 0.0
    %469 = vmatprep.subr.mxu0 0.0
    %470 = vmatpush1.msra.mxu0 0.0
    %471 = vmatprep.subr.mxu0 0.0
    %472 = vmatpush1.msra.mxu0 0.0
    %473 = vmatprep.subr.mxu0 0.0
    %474 = vmatpush1.msra.mxu0 0.0
    %475 = vmatprep.subr.mxu0 0.0
    %476 = vmatpush1.msra.mxu0 0.0
    %477 = vmatprep.subr.mxu0 0.0
    %478 = vmatpush1.msra.mxu0 0.0
    %479 = vmatprep.subr.mxu0 0.0
    %480 = vmatpush1.msra.mxu0 0.0
    %481 = vmatprep.subr.mxu0 0.0
    %482 = vmatpush1.msra.mxu0 0.0
    %483 = vmatprep.subr.mxu0 0.0
    %484 = vmatpush1.msra.mxu0 0.0
    %485 = vmatprep.subr.mxu0 0.0
    %486 = vmatpush1.msra.mxu0 0.0
    %487 = vmatprep.subr.mxu0 0.0
    %488 = vmatpush1.msra.mxu0 0.0
    %489 = vmatprep.subr.mxu0 0.0
    %490 = vmatpush1.msra.mxu0 0.0
    %491 = vmatprep.subr.mxu0 0.0
    %492 = vmatpush1.msra.mxu0 0.0
    %493 = vmatprep.subr.mxu0 0.0
    %494 = vmatpush1.msra.mxu0 0.0
    %495 = vmatprep.subr.mxu0 0.0
    %496 = vmatpush1.msra.mxu0 0.0
    %497 = vmatprep.subr.mxu0 0.0
    %498 = vmatpush1.msra.mxu0 0.0
    %499 = vmatprep.subr.mxu0 0.0
    %500 = vmatpush1.msra.mxu0 0.0
    %501 = vmatprep.mubr.f32.mxu0 0.0
    %502 = vmatmul.mubr.f32.gmra.mrb[0].mxu0 %v435
    %v503 = vpop.f32.mrb[0].mxu0
    %v504 = vadd.f32 %v430, %v503
    %v505 = vpop.f32.mrb[0].mxu0
    %506 = vdwg.mxu0
    %vm507 = vcmask 17408
    %508 = vst.msk [vmem:[#allocation2] sm:$0x3] %vm507, %v504
    // Predicated region
    $region14: #{convnet_forward.1} parent=1 // pred_check
      _
    $region15: #{convnet_forward.1} parent=1 // pred_check_branch
      %510 = sbr.rel (0) target = $region17
    $region16: #{convnet_forward.1} parent=1 // pred_region
      %s512 = ssub.s32 32, 32
      %513 = vsyncadd [#allocation3], %s512
      %s515 = sshll.u32 [#allocation2], 4
      %s516 = int_to_ptr.vmem [resolvable:$true] %s515
      %518 = dma.vmem_to_hbm [thread:$0]  %s516, 32, %s3, [#allocation3]
    $region17: #{convnet_forward.1} parent=1 // pred_fallthru
      _
    // Predicated region
    $region18: #{convnet_forward.1} parent=1 // pred_check
      _
    $region19: #{convnet_forward.1} parent=1 // pred_check_branch
      %520 = sbr.rel (0) target = $region21
    $region20: #{convnet_forward.1} parent=1 // pred_region
      %521 = dma.done [#allocation3], 32
    $region21: #{convnet_forward.1} parent=1 // pred_fallthru
      _
    %522 = vsyncpa [#allocation3], 1

</llo_original>
